<compile_context>
chip_gen: v6e
topology: v6e:2x2x1
jax: 0.10.0
libtpu: 0.0.40
codegen_flags: <defaults>
</compile_context>

<pallas_src>
import math
from functools import partial

import jax
import jax.numpy as jnp
import numpy as np
from jax.experimental import pallas as pl
from jax.experimental.pallas import tpu as pltpu


_MASK = -1.0e30  # finite "-inf" for maxpool padding: exact for realistic inputs and keeps
                 # the discarded junk columns of the flat layout free of inf/NaN.


# ----------------------------------------------------------------------------
# Pallas kernel: fused (binary conv + maxpool + avgpool + 1x1 conv), single MXU dot/image
# ----------------------------------------------------------------------------
def _nl_kernel(x_ref, maskstack_ref, wbig_ref, o_ref, s_ref, *,
               k, C, Cpad, Wp, Mpad, Lpad):
    # x_ref:         (B, C, Lpad)        zero-padded image, rows flattened (h*Wp + w)
    # maskstack_ref: (k*k, 1, Mpad)      per-tap pre-shifted additive mask (0 / -1e30)
    # wbig_ref:      (Cout, (k*k+1)*Cpad) packed [per-tap fused conv+avg | maxpool 1x1]
    # o_ref:         (B, Cout, Mpad)     dense (stride-1) flat output, f32
    # s_ref:         ((k*k+1)*Cpad, Mpad) f32 VMEM scratch: stacked im2col + maxpool rows
    kk = k * k
    B = x_ref.shape[0]
    wbig = wbig_ref[...]                                   # resident, ~1 vreg

    # Zero the scratch once per grid step so the (Cpad - C) pad rows of every tap block
    # (they hit zero weight columns) never hold stale Inf/NaN from a previous kernel.
    s_ref[...] = jnp.zeros_like(s_ref)

    def per_image(b, carry):
        xz = x_ref[b].astype(jnp.float32)                  # (C, Lpad); f32 add/max (v5e-safe)
        mx = None
        for t in range(kk):                                # static k*k tap loop
            di, dj = t // k, t % k
            start = di * Wp + dj
            if start:
                # XLU lane rotation + lane-aligned prefix slice (no unaligned relayout copy)
                shifted = pltpu.roll(xz, Lpad - start, axis=1)[:, :Mpad]
            else:
                shifted = xz[:, :Mpad]
            s_ref[t * Cpad:t * Cpad + C, :] = shifted       # im2col block for tap t
            pm = shifted + maskstack_ref[t]                 # (C,Mpad) + (1,Mpad)
            mx = pm if mx is None else jnp.maximum(mx, pm)  # VPU maxpool accumulation
        s_ref[kk * Cpad:kk * Cpad + C, :] = mx              # maxpool block

        # single fused (conv + avgpool + maxpool) x 1x1 matmul on the MXU
        acc = jnp.dot(wbig, s_ref[...].astype(wbig.dtype),
                      preferred_element_type=jnp.float32)   # (Cout, Mpad), f32 accumulate
        o_ref[b] = acc.astype(o_ref.dtype)
        return carry

    jax.lax.fori_loop(0, B, per_image, 0)


# ----------------------------------------------------------------------------
# Per-generation batch-block / VMEM budgeting
# ----------------------------------------------------------------------------
def _vmem_plan(N, per_image_in_bytes, per_image_out_bytes, fixed_bytes):
    kind = ""
    try:
        kind = jax.devices()[0].device_kind.lower()
    except Exception:
        pass
    if "v7" in kind:      # 64 MiB VMEM, 2 TCs: conservative blocks, ~2 big grid steps
        dual_tc, block_budget, vmem_limit = True, 12 << 20, 32 << 20
    elif "v6" in kind:    # 128 MiB VMEM: collapse a large batch per step
        dual_tc, block_budget, vmem_limit = False, 32 << 20, 64 << 20
    elif "v5" in kind:    # 128 MiB VMEM, 16 MiB scoped default: raise limit moderately
        dual_tc, block_budget, vmem_limit = False, 14 << 20, 32 << 20
    else:
        dual_tc, block_budget, vmem_limit = False, 12 << 20, 32 << 20

    per_image_pipe = 2 * (per_image_in_bytes + per_image_out_bytes)   # double-buffered
    bmax = max(1, (block_budget - fixed_bytes) // per_image_pipe)
    if dual_tc and N >= 2:
        B = min(bmax, (N + 1) // 2)      # aim for one big block per TensorCore
    else:
        B = min(bmax, N)                 # collapse as much batch as fits per step
    while N % B:
        B -= 1
    return B, vmem_limit


# ----------------------------------------------------------------------------
# Wrapper (glue): padding, flattening, weight folding/packing, BlockSpecs
# ----------------------------------------------------------------------------
@partial(jax.jit, static_argnames=("kernel_size", "stride", "padding", "drop", "compute_dtype"))
def non_learnable_layer(x_nchw, conv_w_dense_oihw, lc_w_oihw, *,
                        kernel_size, stride, padding, drop=0.0,
                        compute_dtype=jnp.bfloat16):
    # TODO(synk): drop > 0 (F.dropout) not implemented; the module is used with drop=0.0.
    assert drop == 0.0

    N, C, H, W = x_nchw.shape
    k, s, p = kernel_size, stride, padding
    assert p < k, "pooling window fully inside padding is unsupported (PyTorch needs p<=k//2)"
    Cout = lc_w_oihw.shape[0]
    Hp, Wp = H + 2 * p, W + 2 * p
    Ho_d, Wo_d = Hp - k + 1, Wp - k + 1                  # dense (stride-1) output extents
    Ho, Wo = (H + 2 * p - k) // s + 1, (W + 2 * p - k) // s + 1
    kk = k * k
    Cpad = ((C + 7) // 8) * 8                            # sublane-aligned per-tap block
    Kc = (kk + 1) * Cpad                                 # stacked contraction dim (+max block)

    # flat layout: dense output at q = ho*Wp + wo (columns wo >= Wo_d are junk, dropped later)
    M = Ho_d * Wp
    Mpad = ((M + 127) // 128) * 128                      # lane-dense output stores
    start_max = (k - 1) * (Wp + 1)
    Lpad = ((max(start_max + M, Hp * Wp) + 127) // 128) * 128

    # --- single zero-padded + flattened input copy (NCHW kept; bf16 halves input DMA) ---
    x = x_nchw.astype(jnp.float32)
    xz = jnp.pad(x, ((0, 0), (0, 0), (p, p), (p, p)))                    # (N,C,Hp,Wp)
    xf = jnp.pad(xz.reshape(N, C, Hp * Wp),
                 ((0, 0), (0, 0), (0, Lpad - Hp * Wp))).astype(compute_dtype)

    # --- per-tap pre-shifted additive maxpool mask: 0 in-image, -1e30 at padding/tail ---
    hh = np.arange(Hp)[:, None]
    ww = np.arange(Wp)[None, :]
    valid = (hh >= p) & (hh < p + H) & (ww >= p) & (ww < p + W)
    nm = np.where(valid, 0.0, _MASK).astype(np.float32).reshape(-1)
    nm = np.pad(nm, (0, max(Lpad, start_max + Mpad) - Hp * Wp), constant_values=_MASK)
    maskstack = np.stack(
        [nm[(t // k) * Wp + (t % k):(t // k) * Wp + (t % k) + Mpad] for t in range(kk)]
    ).reshape(kk, 1, Mpad)
    maskstack = jnp.asarray(maskstack)

    # --- fold conv->1x1 and avgpool->1x1 into per-tap (Cout,C) weights and pack them,
    #     together with the maxpool 1x1 weight, into one (Cout, Kc) matrix ---
    w_conv = conv_w_dense_oihw.astype(jnp.float32)            # (C, C, k, k) dense OIHW
    wlc = lc_w_oihw[:, :, 0, 0].astype(jnp.float32)           # (Cout, 3C)
    wlc_conv, wlc_max, wlc_avg = wlc[:, :C], wlc[:, C:2 * C], wlc[:, 2 * C:3 * C]
    # PyTorch AvgPool2d default count_include_pad=True -> plain 1/k^2 over zero-padded input
    wfused = (jnp.einsum('oc,cihw->hwoi', wlc_conv, w_conv)
              + wlc_avg[None, None] / float(k * k))           # (k, k, Cout, C)
    wall = jnp.concatenate([wfused.reshape(kk, Cout, C), wlc_max[None]], axis=0)
    wall = jnp.pad(wall, ((0, 0), (0, 0), (0, Cpad - C)))     # zero pad rows per tap block
    wbig = jnp.transpose(wall, (1, 0, 2)).reshape(Cout, Kc).astype(compute_dtype)

    itemsize = np.dtype(compute_dtype).itemsize
    in_bytes = C * Lpad * itemsize
    out_bytes = Cout * Mpad * 4
    fixed = 2 * (Kc * Mpad * 4 + Cout * Kc * itemsize + kk * Mpad * 4)
    B, vmem_limit = _vmem_plan(N, in_bytes, out_bytes, fixed)
    # TODO(synk): row-tiled grid (with k-1 halo) for images too large for one VMEM block.
    assert fixed + 2 * (in_bytes + out_bytes) < vmem_limit, "image too large; tile over rows"

    kern = partial(_nl_kernel, k=k, C=C, Cpad=Cpad, Wp=Wp, Mpad=Mpad, Lpad=Lpad)

    out_flat = pl.pallas_call(
        kern,
        out_shape=jax.ShapeDtypeStruct((N, Cout, Mpad), jnp.float32),
        grid_spec=pltpu.PrefetchScalarGridSpec(
            num_scalar_prefetch=0,
            grid=(N // B,),
            in_specs=[
                pl.BlockSpec((B, C, Lpad), lambda n: (n, 0, 0)),
                pl.BlockSpec((kk, 1, Mpad), lambda n: (0, 0, 0)),
                pl.BlockSpec((Cout, Kc), lambda n: (0, 0)),
            ],
            out_specs=pl.BlockSpec((B, Cout, Mpad), lambda n: (n, 0, 0)),
            scratch_shapes=[pltpu.VMEM((Kc, Mpad), jnp.float32)],
        ),
        compiler_params=pltpu.CompilerParams(
            dimension_semantics=("parallel",), vmem_limit_bytes=vmem_limit),
    )(xf, maskstack, wbig)

    # drop junk flat columns, subsample for stride, crop -> NCHW output.
    # TODO(synk): a consumer that accepts the (Ho_d, Wp)-padded flat layout could skip this
    # strided copy (it re-touches the whole output in HBM); under jit it at least fuses.
    y = out_flat[:, :, :M].reshape(N, Cout, Ho_d, Wp)
    return y[:, :, ::s, ::s][:, :, :Ho, :Wo]


# ----------------------------------------------------------------------------
# Deterministic parameter construction (mirrors LBConv / nn.Conv2d __init__)
# ----------------------------------------------------------------------------
def make_lbconv_weight(key, C_in, kernel_size, groups, sparsity=0.5, binary=True):
    """Grouped binary-sparse conv weight, expanded to an equivalent dense OIHW weight
    (off-group blocks are zero) so the kernel is a plain dense matmul."""
    cpg = C_in // groups
    opg = C_in // groups
    num = C_in * cpg * kernel_size * kernel_size
    flat = jnp.zeros((num,), jnp.float32)
    if binary:
        n_idx = math.floor(sparsity * num)
        k1, k2 = jax.random.split(key)
        idx = jax.random.randint(k1, (n_idx,), 0, num)               # may repeat
        signs = jax.random.bernoulli(k2, 0.5, (n_idx,)).astype(jnp.float32) * 2.0 - 1.0
        flat = flat.at[idx].set(signs)
    w = flat.reshape(C_in, cpg, kernel_size, kernel_size)            # grouped OIHW
    dense = jnp.zeros((C_in, C_in, kernel_size, kernel_size), jnp.float32)
    for g in range(groups):
        dense = dense.at[g * opg:(g + 1) * opg, g * cpg:(g + 1) * cpg].set(
            w[g * opg:(g + 1) * opg])
    return dense


def make_linear_combination_weight(key, C_in, C_out):
    fan_in = 3 * C_in
    bound = 1.0 / math.sqrt(fan_in)
    return jax.random.uniform(key, (C_out, 3 * C_in, 1, 1), jnp.float32,
                              minval=-bound, maxval=bound)


# ----------------------------------------------------------------------------
# Pure-JAX reference (for correctness sanity check)
# ----------------------------------------------------------------------------
def _reference(x_nchw, conv_w_dense, lc_w, k, s, p):
    x1 = jax.lax.conv_general_dilated(
        x_nchw, conv_w_dense, (s, s), [(p, p), (p, p)],
        dimension_numbers=('NCHW', 'OIHW', 'NCHW'))
    x2 = jax.lax.reduce_window(
        x_nchw, -jnp.inf, jax.lax.max, (1, 1, k, k), (1, 1, s, s),
        [(0, 0), (0, 0), (p, p), (p, p)])
    x3 = jax.lax.reduce_window(
        x_nchw, 0.0, jax.lax.add, (1, 1, k, k), (1, 1, s, s),
        [(0, 0), (0, 0), (p, p), (p, p)]) / float(k * k)
    xc = jnp.concatenate([x1, x2, x3], axis=1)
    return jax.lax.conv_general_dilated(
        xc, lc_w, (1, 1), [(0, 0), (0, 0)],
        dimension_numbers=('NCHW', 'OIHW', 'NCHW'))


if __name__ == "__main__":
    # Module config: NonLearnableLayer(C_in=4, C_out=8, kernel_size=3, stride=1,
    #                                  padding=1, groups=2, sparsity=0.5, binary=True)
    N, C_in, H, W = 2, 4, 16, 16
    C_out, k, s, p, groups, sparsity = 8, 3, 1, 1, 2, 0.5

    root = jax.random.PRNGKey(0)
    kx, kconv, klc = jax.random.split(root, 3)

    x = jax.random.normal(kx, (N, C_in, H, W), jnp.float32)            # NCHW input
    conv_w = make_lbconv_weight(kconv, C_in, k, groups, sparsity, binary=True)
    lc_w = make_linear_combination_weight(klc, C_in, C_out)

    ref = jax.block_until_ready(_reference(x, conv_w, lc_w, k, s, p))

    # strict check: f32 compute path must match the unfused reference closely
    out_f32 = jax.block_until_ready(non_learnable_layer(
        x, conv_w, lc_w, kernel_size=k, stride=s, padding=p, drop=0.0,
        compute_dtype=jnp.float32))
    np.testing.assert_allclose(np.asarray(out_f32), np.asarray(ref), rtol=1e-4, atol=1e-4)
    assert out_f32.shape == (N, C_out, H, W)

    # perf path: bf16 operands with f32 accumulation -> bf16-level tolerance
    out_bf16 = jax.block_until_ready(non_learnable_layer(
        x, conv_w, lc_w, kernel_size=k, stride=s, padding=p, drop=0.0,
        compute_dtype=jnp.bfloat16))
    np.testing.assert_allclose(np.asarray(out_bf16), np.asarray(ref), rtol=1e-1, atol=1e-1)
    assert out_bf16.shape == (N, C_out, H, W)

    print("KERNEL_OK")
</pallas_src>

<mosaic_0001>
module attributes {stable_mosaic.version = 11 : i64} {
  func.func @_nl_kernel(%arg0: i32, %arg1: memref<2x4x384xf32, #tpu.memory_space<vmem>>, %arg2: memref<9x1x384xf32, #tpu.memory_space<vmem>>, %arg3: memref<8x80xf32, #tpu.memory_space<vmem>>, %arg4: memref<2x8x384xf32, #tpu.memory_space<vmem>>, %arg5: memref<80x384xf32, #tpu.memory_space<vmem>>) attributes {dimension_semantics = [#tpu.dimension_semantics<parallel>], iteration_bounds = array<i64: 1>, scalar_prefetch = 0 : i64, scratch_operands = 1 : i64, tpu.core_type = #tpu.core_type<tc>, window_params = [{transform_indices = @transform_0, window_bounds = array<i64: 2, 4, 384>}, {pipeline_mode = #tpu.pipeline_mode<synchronous>, transform_indices = @transform_1, window_bounds = array<i64: 9, 1, 384>}, {pipeline_mode = #tpu.pipeline_mode<synchronous>, transform_indices = @transform_2, window_bounds = array<i64: 8, 80>}, {transform_indices = @transform_3, window_bounds = array<i64: 2, 8, 384>}]} {
    %c0 = arith.constant 0 : index
    %c0_0 = arith.constant 0 : index
    %0 = vector.load %arg3[%c0, %c0_0] : memref<8x80xf32, #tpu.memory_space<vmem>>, vector<8x80xf32>
    %cst = arith.constant 0.000000e+00 : f32
    %1 = vector.broadcast %cst : f32 to vector<80x384xf32>
    %c0_1 = arith.constant 0 : index
    %c0_2 = arith.constant 0 : index
    %2 = vector.load %arg5[%c0_1, %c0_2] : memref<80x384xf32, #tpu.memory_space<vmem>>, vector<80x384xf32>
    tpu.vector_store %arg5[%c0_1, %c0_2], %1 {strides = array<i32>} : memref<80x384xf32, #tpu.memory_space<vmem>>, vector<80x384xf32>,
    %c0_i32 = arith.constant 0 : i32
    %c2_i32 = arith.constant 2 : i32
    %3 = arith.addi %c0_i32, %c2_i32 : i32
    %c1_i32 = arith.constant 1 : i32
    scf.for %arg6 = %c0_i32 to %3 step %c1_i32  : i32 {
      %4 = arith.index_cast %arg6 : i32 to index
      %c0_4 = arith.constant 0 : index
      %c0_5 = arith.constant 0 : index
      %5 = vector.load %arg1[%4, %c0_4, %c0_5] : memref<2x4x384xf32, #tpu.memory_space<vmem>>, vector<1x4x384xf32>
      %6 = vector.shape_cast %5 : vector<1x4x384xf32> to vector<4x384xf32>
      %c0_6 = arith.constant 0 : index
      %c0_7 = arith.constant 0 : index
      %7 = vector.load %arg5[%c0_6, %c0_7] : memref<80x384xf32, #tpu.memory_space<vmem>>, vector<4x384xf32>
      tpu.vector_store %arg5[%c0_6, %c0_7], %6 {strides = array<i32>} : memref<80x384xf32, #tpu.memory_space<vmem>>, vector<4x384xf32>,
      %c0_8 = arith.constant 0 : index
      %c0_9 = arith.constant 0 : index
      %c0_10 = arith.constant 0 : index
      %8 = vector.load %arg2[%c0_8, %c0_9, %c0_10] : memref<9x1x384xf32, #tpu.memory_space<vmem>>, vector<1x1x384xf32>
      %9 = vector.shape_cast %8 : vector<1x1x384xf32> to vector<1x384xf32>
      %10 = vector.broadcast %9 : vector<1x384xf32> to vector<4x384xf32>
      %11 = arith.addf %6, %10 : vector<4x384xf32>
      %c383_i32 = arith.constant 383 : i32
      %12 = tpu.dynamic_rotate %6 by %c383_i32 dim 1 : vector<4x384xf32>, i32 -> vector<4x384xf32>
      %c8 = arith.constant 8 : index
      %c0_11 = arith.constant 0 : index
      %13 = vector.load %arg5[%c8, %c0_11] : memref<80x384xf32, #tpu.memory_space<vmem>>, vector<4x384xf32>
      tpu.vector_store %arg5[%c8, %c0_11], %12 {strides = array<i32>} : memref<80x384xf32, #tpu.memory_space<vmem>>, vector<4x384xf32>,
      %c1 = arith.constant 1 : index
      %c0_12 = arith.constant 0 : index
      %c0_13 = arith.constant 0 : index
      %14 = vector.load %arg2[%c1, %c0_12, %c0_13] : memref<9x1x384xf32, #tpu.memory_space<vmem>>, vector<1x1x384xf32>
      %15 = vector.shape_cast %14 : vector<1x1x384xf32> to vector<1x384xf32>
      %16 = vector.broadcast %15 : vector<1x384xf32> to vector<4x384xf32>
      %17 = arith.addf %12, %16 : vector<4x384xf32>
      %18 = arith.maximumf %11, %17 : vector<4x384xf32>
      %c382_i32 = arith.constant 382 : i32
      %19 = tpu.dynamic_rotate %6 by %c382_i32 dim 1 : vector<4x384xf32>, i32 -> vector<4x384xf32>
      %c16 = arith.constant 16 : index
      %c0_14 = arith.constant 0 : index
      %20 = vector.load %arg5[%c16, %c0_14] : memref<80x384xf32, #tpu.memory_space<vmem>>, vector<4x384xf32>
      tpu.vector_store %arg5[%c16, %c0_14], %19 {strides = array<i32>} : memref<80x384xf32, #tpu.memory_space<vmem>>, vector<4x384xf32>,
      %c2 = arith.constant 2 : index
      %c0_15 = arith.constant 0 : index
      %c0_16 = arith.constant 0 : index
      %21 = vector.load %arg2[%c2, %c0_15, %c0_16] : memref<9x1x384xf32, #tpu.memory_space<vmem>>, vector<1x1x384xf32>
      %22 = vector.shape_cast %21 : vector<1x1x384xf32> to vector<1x384xf32>
      %23 = vector.broadcast %22 : vector<1x384xf32> to vector<4x384xf32>
      %24 = arith.addf %19, %23 : vector<4x384xf32>
      %25 = arith.maximumf %18, %24 : vector<4x384xf32>
      %c366_i32 = arith.constant 366 : i32
      %26 = tpu.dynamic_rotate %6 by %c366_i32 dim 1 : vector<4x384xf32>, i32 -> vector<4x384xf32>
      %c24 = arith.constant 24 : index
      %c0_17 = arith.constant 0 : index
      %27 = vector.load %arg5[%c24, %c0_17] : memref<80x384xf32, #tpu.memory_space<vmem>>, vector<4x384xf32>
      tpu.vector_store %arg5[%c24, %c0_17], %26 {strides = array<i32>} : memref<80x384xf32, #tpu.memory_space<vmem>>, vector<4x384xf32>,
      %c3 = arith.constant 3 : index
      %c0_18 = arith.constant 0 : index
      %c0_19 = arith.constant 0 : index
      %28 = vector.load %arg2[%c3, %c0_18, %c0_19] : memref<9x1x384xf32, #tpu.memory_space<vmem>>, vector<1x1x384xf32>
      %29 = vector.shape_cast %28 : vector<1x1x384xf32> to vector<1x384xf32>
      %30 = vector.broadcast %29 : vector<1x384xf32> to vector<4x384xf32>
      %31 = arith.addf %26, %30 : vector<4x384xf32>
      %32 = arith.maximumf %25, %31 : vector<4x384xf32>
      %c365_i32 = arith.constant 365 : i32
      %33 = tpu.dynamic_rotate %6 by %c365_i32 dim 1 : vector<4x384xf32>, i32 -> vector<4x384xf32>
      %c32 = arith.constant 32 : index
      %c0_20 = arith.constant 0 : index
      %34 = vector.load %arg5[%c32, %c0_20] : memref<80x384xf32, #tpu.memory_space<vmem>>, vector<4x384xf32>
      tpu.vector_store %arg5[%c32, %c0_20], %33 {strides = array<i32>} : memref<80x384xf32, #tpu.memory_space<vmem>>, vector<4x384xf32>,
      %c4 = arith.constant 4 : index
      %c0_21 = arith.constant 0 : index
      %c0_22 = arith.constant 0 : index
      %35 = vector.load %arg2[%c4, %c0_21, %c0_22] : memref<9x1x384xf32, #tpu.memory_space<vmem>>, vector<1x1x384xf32>
      %36 = vector.shape_cast %35 : vector<1x1x384xf32> to vector<1x384xf32>
      %37 = vector.broadcast %36 : vector<1x384xf32> to vector<4x384xf32>
      %38 = arith.addf %33, %37 : vector<4x384xf32>
      %39 = arith.maximumf %32, %38 : vector<4x384xf32>
      %c364_i32 = arith.constant 364 : i32
      %40 = tpu.dynamic_rotate %6 by %c364_i32 dim 1 : vector<4x384xf32>, i32 -> vector<4x384xf32>
      %c40 = arith.constant 40 : index
      %c0_23 = arith.constant 0 : index
      %41 = vector.load %arg5[%c40, %c0_23] : memref<80x384xf32, #tpu.memory_space<vmem>>, vector<4x384xf32>
      tpu.vector_store %arg5[%c40, %c0_23], %40 {strides = array<i32>} : memref<80x384xf32, #tpu.memory_space<vmem>>, vector<4x384xf32>,
      %c5 = arith.constant 5 : index
      %c0_24 = arith.constant 0 : index
      %c0_25 = arith.constant 0 : index
      %42 = vector.load %arg2[%c5, %c0_24, %c0_25] : memref<9x1x384xf32, #tpu.memory_space<vmem>>, vector<1x1x384xf32>
      %43 = vector.shape_cast %42 : vector<1x1x384xf32> to vector<1x384xf32>
      %44 = vector.broadcast %43 : vector<1x384xf32> to vector<4x384xf32>
      %45 = arith.addf %40, %44 : vector<4x384xf32>
      %46 = arith.maximumf %39, %45 : vector<4x384xf32>
      %c348_i32 = arith.constant 348 : i32
      %47 = tpu.dynamic_rotate %6 by %c348_i32 dim 1 : vector<4x384xf32>, i32 -> vector<4x384xf32>
      %c48 = arith.constant 48 : index
      %c0_26 = arith.constant 0 : index
      %48 = vector.load %arg5[%c48, %c0_26] : memref<80x384xf32, #tpu.memory_space<vmem>>, vector<4x384xf32>
      tpu.vector_store %arg5[%c48, %c0_26], %47 {strides = array<i32>} : memref<80x384xf32, #tpu.memory_space<vmem>>, vector<4x384xf32>,
      %c6 = arith.constant 6 : index
      %c0_27 = arith.constant 0 : index
      %c0_28 = arith.constant 0 : index
      %49 = vector.load %arg2[%c6, %c0_27, %c0_28] : memref<9x1x384xf32, #tpu.memory_space<vmem>>, vector<1x1x384xf32>
      %50 = vector.shape_cast %49 : vector<1x1x384xf32> to vector<1x384xf32>
      %51 = vector.broadcast %50 : vector<1x384xf32> to vector<4x384xf32>
      %52 = arith.addf %47, %51 : vector<4x384xf32>
      %53 = arith.maximumf %46, %52 : vector<4x384xf32>
      %c347_i32 = arith.constant 347 : i32
      %54 = tpu.dynamic_rotate %6 by %c347_i32 dim 1 : vector<4x384xf32>, i32 -> vector<4x384xf32>
      %c56 = arith.constant 56 : index
      %c0_29 = arith.constant 0 : index
      %55 = vector.load %arg5[%c56, %c0_29] : memref<80x384xf32, #tpu.memory_space<vmem>>, vector<4x384xf32>
      tpu.vector_store %arg5[%c56, %c0_29], %54 {strides = array<i32>} : memref<80x384xf32, #tpu.memory_space<vmem>>, vector<4x384xf32>,
      %c7 = arith.constant 7 : index
      %c0_30 = arith.constant 0 : index
      %c0_31 = arith.constant 0 : index
      %56 = vector.load %arg2[%c7, %c0_30, %c0_31] : memref<9x1x384xf32, #tpu.memory_space<vmem>>, vector<1x1x384xf32>
      %57 = vector.shape_cast %56 : vector<1x1x384xf32> to vector<1x384xf32>
      %58 = vector.broadcast %57 : vector<1x384xf32> to vector<4x384xf32>
      %59 = arith.addf %54, %58 : vector<4x384xf32>
      %60 = arith.maximumf %53, %59 : vector<4x384xf32>
      %c346_i32 = arith.constant 346 : i32
      %61 = tpu.dynamic_rotate %6 by %c346_i32 dim 1 : vector<4x384xf32>, i32 -> vector<4x384xf32>
      %c64 = arith.constant 64 : index
      %c0_32 = arith.constant 0 : index
      %62 = vector.load %arg5[%c64, %c0_32] : memref<80x384xf32, #tpu.memory_space<vmem>>, vector<4x384xf32>
      tpu.vector_store %arg5[%c64, %c0_32], %61 {strides = array<i32>} : memref<80x384xf32, #tpu.memory_space<vmem>>, vector<4x384xf32>,
      %c8_33 = arith.constant 8 : index
      %c0_34 = arith.constant 0 : index
      %c0_35 = arith.constant 0 : index
      %63 = vector.load %arg2[%c8_33, %c0_34, %c0_35] : memref<9x1x384xf32, #tpu.memory_space<vmem>>, vector<1x1x384xf32>
      %64 = vector.shape_cast %63 : vector<1x1x384xf32> to vector<1x384xf32>
      %65 = vector.broadcast %64 : vector<1x384xf32> to vector<4x384xf32>
      %66 = arith.addf %61, %65 : vector<4x384xf32>
      %67 = arith.maximumf %60, %66 : vector<4x384xf32>
      %c72 = arith.constant 72 : index
      %c0_36 = arith.constant 0 : index
      %68 = vector.load %arg5[%c72, %c0_36] : memref<80x384xf32, #tpu.memory_space<vmem>>, vector<4x384xf32>
      tpu.vector_store %arg5[%c72, %c0_36], %67 {strides = array<i32>} : memref<80x384xf32, #tpu.memory_space<vmem>>, vector<4x384xf32>,
      %c0_37 = arith.constant 0 : index
      %c0_38 = arith.constant 0 : index
      %69 = vector.load %arg5[%c0_37, %c0_38] : memref<80x384xf32, #tpu.memory_space<vmem>>, vector<80x384xf32>
      %cst_39 = arith.constant dense<0.000000e+00> : vector<8x384xf32>
      %70 = tpu.matmul %0, %69, %cst_39 {dimension_numbers = #tpu.dot_dimension_numbers<[1], [0], [0], [1], [0, 0, 1, 1], [], []>} : vector<8x80xf32>, vector<80x384xf32>, vector<8x384xf32> -> vector<8x384xf32>
      %71 = arith.index_cast %arg6 : i32 to index
      %c0_40 = arith.constant 0 : index
      %c0_41 = arith.constant 0 : index
      %72 = vector.load %arg4[%71, %c0_40, %c0_41] : memref<2x8x384xf32, #tpu.memory_space<vmem>>, vector<1x8x384xf32>
      %73 = vector.shape_cast %72 : vector<1x8x384xf32> to vector<8x384xf32>
      %74 = vector.shape_cast %70 : vector<8x384xf32> to vector<1x8x384xf32>
      tpu.vector_store %arg4[%71, %c0_40, %c0_41], %74 {strides = array<i32>} : memref<2x8x384xf32, #tpu.memory_space<vmem>>, vector<1x8x384xf32>,
    }
    %c2_i32_3 = arith.constant 2 : i32
    return
  }
  func.func @transform_0(%arg0: i32) -> (i32, i32, i32) {
    %c0_i32 = arith.constant 0 : i32
    %c0_i32_0 = arith.constant 0 : i32
    %c0_i32_1 = arith.constant 0 : i32
    return %arg0, %c0_i32, %c0_i32_0 : i32, i32, i32
  }
  func.func @transform_1(%arg0: i32) -> (i32, i32, i32) {
    %c0_i32 = arith.constant 0 : i32
    %c0_i32_0 = arith.constant 0 : i32
    %c0_i32_1 = arith.constant 0 : i32
    %c0_i32_2 = arith.constant 0 : i32
    return %c0_i32, %c0_i32_0, %c0_i32_1 : i32, i32, i32
  }
  func.func @transform_2(%arg0: i32) -> (i32, i32) {
    %c0_i32 = arith.constant 0 : i32
    %c0_i32_0 = arith.constant 0 : i32
    %c0_i32_1 = arith.constant 0 : i32
    return %c0_i32, %c0_i32_0 : i32, i32
  }
  func.func @transform_3(%arg0: i32) -> (i32, i32, i32) {
    %c0_i32 = arith.constant 0 : i32
    %c0_i32_0 = arith.constant 0 : i32
    %c0_i32_1 = arith.constant 0 : i32
    return %arg0, %c0_i32, %c0_i32_0 : i32, i32, i32
  }
}

</mosaic_0001>

<llo_original>
// kernel: non_learnable_layer.1
$region0: #{non_learnable_layer.1}
  #allocation0 [shape = 'u32[]', space=smem, size = 0x4, offset = 0x4, fixed_abs, tag = 'smem constant byte address 0x4 - core index']
  #allocation1 [shape = 'u32[144,128]{1,0:T(1,128)}', space=vmem, size = 0x12000, scoped, tag = 'internal scratch']
  #allocation2 [shape = 'f32[80,384]{1,0:T(8,128)}', space=vmem, size = 0x1e000, scoped, tag = 'scratch operand']
  %s0 = inlined_call_operand.vmem [shape: f32[2,4,384], index: 0, kind: input, shape index: {}]
  %s1 = inlined_call_operand.vmem [shape: f32[9,1,384], index: 1, kind: input, shape index: {}]
  %s2 = inlined_call_operand.vmem [shape: f32[8,80], index: 2, kind: input, shape index: {}]
  %s3 = inlined_call_operand.vmem [shape: f32[2,8,384], index: 3, kind: output, shape index: {}]
  %s4 = sld [smem:[#allocation0]]
  $region29: #{non_learnable_layer.1} parent=0
    _
  %s6 = ssub.s32 1, %s4
  %s7 = scalar_select 0, %s6, %s4
  // Predicated region
  $region2: #{non_learnable_layer.1} parent=0 // pred_check
    _
  $region3: #{non_learnable_layer.1} parent=0 // pred_check_branch
    %9 = sbr.rel (0) target = $region5
  $region4: #{non_learnable_layer.1} parent=0 // pred_region
    _
  $region5: #{non_learnable_layer.1} parent=0 // pred_fallthru
    _
  // Predicated region
  $region6: #{non_learnable_layer.1} parent=0 // pred_check
    _
  $region7: #{non_learnable_layer.1} parent=0 // pred_check_branch
    %11 = sbr.rel (0) target = $region9
  $region8: #{non_learnable_layer.1} parent=0 // pred_region
    _
  $region9: #{non_learnable_layer.1} parent=0 // pred_fallthru
    _
  // Predicated region
  $region10: #{non_learnable_layer.1} parent=0 // pred_check
    _
  $region11: #{non_learnable_layer.1} parent=0 // pred_check_branch
    %13 = sbr.rel (0) target = $region13
  $region12: #{non_learnable_layer.1} parent=0 // pred_region
    _
  $region13: #{non_learnable_layer.1} parent=0 // pred_fallthru
    _
  %v14 = vld [vmem:[%s2] sm:$0xff]
  %15 = vst [vmem:[#allocation2] sm:$0xff] 0.0
  %16 = vst [vmem:[#allocation2 + $0x8] sm:$0xff] 0.0
  %17 = vst [vmem:[#allocation2 + $0x10] sm:$0xff] 0.0
  %18 = vst [vmem:[#allocation2 + $0x18] sm:$0xff] 0.0
  %19 = vst [vmem:[#allocation2 + $0x20] sm:$0xff] 0.0
  %20 = vst [vmem:[#allocation2 + $0x28] sm:$0xff] 0.0
  %21 = vst [vmem:[#allocation2 + $0x30] sm:$0xff] 0.0
  %22 = vst [vmem:[#allocation2 + $0x38] sm:$0xff] 0.0
  %23 = vst [vmem:[#allocation2 + $0x40] sm:$0xff] 0.0
  %24 = vst [vmem:[#allocation2 + $0x48] sm:$0xff] 0.0
  %25 = vst [vmem:[#allocation2 + $0x50] sm:$0xff] 0.0
  %26 = vst [vmem:[#allocation2 + $0x58] sm:$0xff] 0.0
  %27 = vst [vmem:[#allocation2 + $0x60] sm:$0xff] 0.0
  %28 = vst [vmem:[#allocation2 + $0x68] sm:$0xff] 0.0
  %29 = vst [vmem:[#allocation2 + $0x70] sm:$0xff] 0.0
  %30 = vst [vmem:[#allocation2 + $0x78] sm:$0xff] 0.0
  %31 = vst [vmem:[#allocation2 + $0x80] sm:$0xff] 0.0
  %32 = vst [vmem:[#allocation2 + $0x88] sm:$0xff] 0.0
  %33 = vst [vmem:[#allocation2 + $0x90] sm:$0xff] 0.0
  %34 = vst [vmem:[#allocation2 + $0x98] sm:$0xff] 0.0
  %35 = vst [vmem:[#allocation2 + $0xa0] sm:$0xff] 0.0
  %36 = vst [vmem:[#allocation2 + $0xa8] sm:$0xff] 0.0
  %37 = vst [vmem:[#allocation2 + $0xb0] sm:$0xff] 0.0
  %38 = vst [vmem:[#allocation2 + $0xb8] sm:$0xff] 0.0
  %39 = vst [vmem:[#allocation2 + $0xc0] sm:$0xff] 0.0
  %40 = vst [vmem:[#allocation2 + $0xc8] sm:$0xff] 0.0
  %41 = vst [vmem:[#allocation2 + $0xd0] sm:$0xff] 0.0
  %42 = vst [vmem:[#allocation2 + $0xd8] sm:$0xff] 0.0
  %43 = vst [vmem:[#allocation2 + $0xe0] sm:$0xff] 0.0
  %44 = vst [vmem:[#allocation2 + $0xe8] sm:$0xff] 0.0
  loop: start=0, step=1, limit=2
  $region14: #{non_learnable_layer.1} parent=0 // loop_pre_header
    _
  $region15: #{non_learnable_layer.1} parent=0 // loop_header
    %s46 = sphi 0, %s50
    %p47 = scmp.ge.s32.totalorder %s46, 2
  $region16: #{non_learnable_layer.1} parent=0 // loop_header_branch
    %49 = sbr.rel (%p47) target = $region20
  $region17: #{non_learnable_layer.1} parent=0 // loop_body
    %s51 = smul.u32 %s46, 3
    %s52 = smul.addr %s51, 4
    %s53 = scalar_lea.vmem %s0, %s52
    %v54 = vld [vmem:[%s53] sm:$0xff]
    %v55 = vld [vmem:[%s53 + $0x8] sm:$0xf]
    %v57 = vcombine.high %v54, %v54
    %59 = vst [vmem:[#allocation2] sm:$0xf] %v54
    %60 = vst [vmem:[#allocation2 + $0x8] sm:$0xf] %v57
    %61 = vst [vmem:[#allocation2 + $0x10] sm:$0xf] %v55
    %v62 = vld [vmem:[%s1] sm:$0x7]
    %v64 = vlaneseq
    %v65 = vshrl.u32 %v64, 7
    %v66 = vsub.s32 0, %v65
    %v67 = vrot.slane %v62, %v66
    %v68 = vlaneseq
    %v69 = vshrl.u32 %v68, 7
    %v70 = vsub.s32 1, %v69
    %v71 = vrot.slane %v62, %v70
    %v72 = vlaneseq
    %v73 = vshrl.u32 %v72, 7
    %v74 = vsub.s32 2, %v73
    %v75 = vrot.slane %v62, %v74
    %v77 = vcombine.low %v67, %v71
    %v79 = vadd.f32 %v54, %v77
    %v80 = vadd.f32 %v55, %v75
    %81 = vrot.lane.b32.xlu0 %v54, 127
    %v82 = vpop.permute.xlu0 %81
    %83 = vrot.lane.b32.xlu0 %v57, 127
    %v84 = vpop.permute.xlu0 %83
    %85 = vrot.lane.b32.xlu0 %v55, 127
    %v86 = vpop.permute.xlu0 %85
    %v87 = vlaneseq
    %v88 = vand.u32 %v87, 127
    %vm89 = vcmp.lt.s32.totalorder %v88, 127
    %v90 = vsel %vm89, %v84, %v86
    %v91 = vsel %vm89, %v82, %v84
    %v92 = vsel %vm89, %v86, %v82
    %93 = vst [vmem:[#allocation2 + $0x18] sm:$0xf] %v91
    %94 = vst [vmem:[#allocation2 + $0x20] sm:$0xf] %v90
    %95 = vst [vmem:[#allocation2 + $0x28] sm:$0xf] %v92
    %s96 = scalar_lea.vmem %s1, 3
    %v97 = vld [vmem:[%s96] sm:$0x7]
    %v99 = vlaneseq
    %v100 = vshrl.u32 %v99, 7
    %v101 = vsub.s32 0, %v100
    %v102 = vrot.slane %v97, %v101
    %v103 = vlaneseq
    %v104 = vshrl.u32 %v103, 7
    %v105 = vsub.s32 1, %v104
    %v106 = vrot.slane %v97, %v105
    %v107 = vlaneseq
    %v108 = vshrl.u32 %v107, 7
    %v109 = vsub.s32 2, %v108
    %v110 = vrot.slane %v97, %v109
    %v114 = vadd.f32 %v91, %v102
    %v115 = vadd.f32 %v90, %v106
    %v116 = vadd.f32 %v92, %v110
    %v119 = vcombine.low %v114, %v115
    %v121 = vmax.f32 %v79, %v119
    %v122 = vmax.f32 %v80, %v116
    %123 = vrot.lane.b32.xlu0 %v54, 126
    %v124 = vpop.permute.xlu0 %123
    %125 = vrot.lane.b32.xlu0 %v57, 126
    %v126 = vpop.permute.xlu0 %125
    %127 = vrot.lane.b32.xlu0 %v55, 126
    %v128 = vpop.permute.xlu0 %127
    %vm129 = vcmp.lt.s32.totalorder %v88, 126
    %v130 = vsel %vm129, %v126, %v128
    %v131 = vsel %vm129, %v124, %v126
    %v132 = vsel %vm129, %v128, %v124
    %133 = vst [vmem:[#allocation2 + $0x30] sm:$0xf] %v131
    %134 = vst [vmem:[#allocation2 + $0x38] sm:$0xf] %v130
    %135 = vst [vmem:[#allocation2 + $0x40] sm:$0xf] %v132
    %s136 = scalar_lea.vmem %s1, 6
    %v137 = vld [vmem:[%s136] sm:$0x7]
    %v139 = vlaneseq
    %v140 = vshrl.u32 %v139, 7
    %v141 = vsub.s32 0, %v140
    %v142 = vrot.slane %v137, %v141
    %v143 = vlaneseq
    %v144 = vshrl.u32 %v143, 7
    %v145 = vsub.s32 1, %v144
    %v146 = vrot.slane %v137, %v145
    %v147 = vlaneseq
    %v148 = vshrl.u32 %v147, 7
    %v149 = vsub.s32 2, %v148
    %v150 = vrot.slane %v137, %v149
    %v154 = vadd.f32 %v131, %v142
    %v155 = vadd.f32 %v130, %v146
    %v156 = vadd.f32 %v132, %v150
    %v159 = vcombine.low %v154, %v155
    %v161 = vmax.f32 %v121, %v159
    %v162 = vmax.f32 %v122, %v156
    %163 = vrot.lane.b32.xlu0 %v54, 110
    %v164 = vpop.permute.xlu0 %163
    %165 = vrot.lane.b32.xlu0 %v57, 110
    %v166 = vpop.permute.xlu0 %165
    %167 = vrot.lane.b32.xlu0 %v55, 110
    %v168 = vpop.permute.xlu0 %167
    %vm169 = vcmp.lt.s32.totalorder %v88, 110
    %v170 = vsel %vm169, %v166, %v168
    %v171 = vsel %vm169, %v164, %v166
    %v172 = vsel %vm169, %v168, %v164
    %173 = vst [vmem:[#allocation2 + $0x48] sm:$0xf] %v171
    %174 = vst [vmem:[#allocation2 + $0x50] sm:$0xf] %v170
    %175 = vst [vmem:[#allocation2 + $0x58] sm:$0xf] %v172
    %s176 = scalar_lea.vmem %s1, 9
    %v177 = vld [vmem:[%s176] sm:$0x7]
    %v179 = vlaneseq
    %v180 = vshrl.u32 %v179, 7
    %v181 = vsub.s32 0, %v180
    %v182 = vrot.slane %v177, %v181
    %v183 = vlaneseq
    %v184 = vshrl.u32 %v183, 7
    %v185 = vsub.s32 1, %v184
    %v186 = vrot.slane %v177, %v185
    %v187 = vlaneseq
    %v188 = vshrl.u32 %v187, 7
    %v189 = vsub.s32 2, %v188
    %v190 = vrot.slane %v177, %v189
    %v194 = vadd.f32 %v171, %v182
    %v195 = vadd.f32 %v170, %v186
    %v196 = vadd.f32 %v172, %v190
    %v199 = vcombine.low %v194, %v195
    %v201 = vmax.f32 %v161, %v199
    %v202 = vmax.f32 %v162, %v196
    %203 = vrot.lane.b32.xlu0 %v54, 109
    %v204 = vpop.permute.xlu0 %203
    %205 = vrot.lane.b32.xlu0 %v57, 109
    %v206 = vpop.permute.xlu0 %205
    %207 = vrot.lane.b32.xlu0 %v55, 109
    %v208 = vpop.permute.xlu0 %207
    %vm209 = vcmp.lt.s32.totalorder %v88, 109
    %v210 = vsel %vm209, %v206, %v208
    %v211 = vsel %vm209, %v204, %v206
    %v212 = vsel %vm209, %v208, %v204
    %213 = vst [vmem:[#allocation2 + $0x60] sm:$0xf] %v211
    %214 = vst [vmem:[#allocation2 + $0x68] sm:$0xf] %v210
    %215 = vst [vmem:[#allocation2 + $0x70] sm:$0xf] %v212
    %s216 = scalar_lea.vmem %s1, 12
    %v217 = vld [vmem:[%s216] sm:$0x7]
    %v219 = vlaneseq
    %v220 = vshrl.u32 %v219, 7
    %v221 = vsub.s32 0, %v220
    %v222 = vrot.slane %v217, %v221
    %v223 = vlaneseq
    %v224 = vshrl.u32 %v223, 7
    %v225 = vsub.s32 1, %v224
    %v226 = vrot.slane %v217, %v225
    %v227 = vlaneseq
    %v228 = vshrl.u32 %v227, 7
    %v229 = vsub.s32 2, %v228
    %v230 = vrot.slane %v217, %v229
    %v234 = vadd.f32 %v211, %v222
    %v235 = vadd.f32 %v210, %v226
    %v236 = vadd.f32 %v212, %v230
    %v239 = vcombine.low %v234, %v235
    %v241 = vmax.f32 %v201, %v239
    %v242 = vmax.f32 %v202, %v236
    %243 = vrot.lane.b32.xlu0 %v54, 108
    %v244 = vpop.permute.xlu0 %243
    %245 = vrot.lane.b32.xlu0 %v57, 108
    %v246 = vpop.permute.xlu0 %245
    %247 = vrot.lane.b32.xlu0 %v55, 108
    %v248 = vpop.permute.xlu0 %247
    %vm249 = vcmp.lt.s32.totalorder %v88, 108
    %v250 = vsel %vm249, %v246, %v248
    %v251 = vsel %vm249, %v244, %v246
    %v252 = vsel %vm249, %v248, %v244
    %253 = vst [vmem:[#allocation2 + $0x78] sm:$0xf] %v251
    %254 = vst [vmem:[#allocation2 + $0x80] sm:$0xf] %v250
    %255 = vst [vmem:[#allocation2 + $0x88] sm:$0xf] %v252
    %s256 = scalar_lea.vmem %s1, 15
    %v257 = vld [vmem:[%s256] sm:$0x7]
    %v259 = vlaneseq
    %v260 = vshrl.u32 %v259, 7
    %v261 = vsub.s32 0, %v260
    %v262 = vrot.slane %v257, %v261
    %v263 = vlaneseq
    %v264 = vshrl.u32 %v263, 7
    %v265 = vsub.s32 1, %v264
    %v266 = vrot.slane %v257, %v265
    %v267 = vlaneseq
    %v268 = vshrl.u32 %v267, 7
    %v269 = vsub.s32 2, %v268
    %v270 = vrot.slane %v257, %v269
    %v274 = vadd.f32 %v251, %v262
    %v275 = vadd.f32 %v250, %v266
    %v276 = vadd.f32 %v252, %v270
    %v279 = vcombine.low %v274, %v275
    %v281 = vmax.f32 %v241, %v279
    %v282 = vmax.f32 %v242, %v276
    %283 = vrot.lane.b32.xlu0 %v54, 92
    %v284 = vpop.permute.xlu0 %283
    %285 = vrot.lane.b32.xlu0 %v57, 92
    %v286 = vpop.permute.xlu0 %285
    %287 = vrot.lane.b32.xlu0 %v55, 92
    %v288 = vpop.permute.xlu0 %287
    %vm289 = vcmp.lt.s32.totalorder %v88, 92
    %v290 = vsel %vm289, %v286, %v288
    %v291 = vsel %vm289, %v284, %v286
    %v292 = vsel %vm289, %v288, %v284
    %293 = vst [vmem:[#allocation2 + $0x90] sm:$0xf] %v291
    %294 = vst [vmem:[#allocation2 + $0x98] sm:$0xf] %v290
    %295 = vst [vmem:[#allocation2 + $0xa0] sm:$0xf] %v292
    %s296 = scalar_lea.vmem %s1, 18
    %v297 = vld [vmem:[%s296] sm:$0x7]
    %v299 = vlaneseq
    %v300 = vshrl.u32 %v299, 7
    %v301 = vsub.s32 0, %v300
    %v302 = vrot.slane %v297, %v301
    %v303 = vlaneseq
    %v304 = vshrl.u32 %v303, 7
    %v305 = vsub.s32 1, %v304
    %v306 = vrot.slane %v297, %v305
    %v307 = vlaneseq
    %v308 = vshrl.u32 %v307, 7
    %v309 = vsub.s32 2, %v308
    %v310 = vrot.slane %v297, %v309
    %v314 = vadd.f32 %v291, %v302
    %v315 = vadd.f32 %v290, %v306
    %v316 = vadd.f32 %v292, %v310
    %v319 = vcombine.low %v314, %v315
    %v321 = vmax.f32 %v281, %v319
    %v322 = vmax.f32 %v282, %v316
    %323 = vrot.lane.b32.xlu0 %v54, 91
    %v324 = vpop.permute.xlu0 %323
    %325 = vrot.lane.b32.xlu0 %v57, 91
    %v326 = vpop.permute.xlu0 %325
    %327 = vrot.lane.b32.xlu0 %v55, 91
    %v328 = vpop.permute.xlu0 %327
    %vm329 = vcmp.lt.s32.totalorder %v88, 91
    %v330 = vsel %vm329, %v326, %v328
    %v331 = vsel %vm329, %v324, %v326
    %v332 = vsel %vm329, %v328, %v324
    %333 = vst [vmem:[#allocation2 + $0xa8] sm:$0xf] %v331
    %334 = vst [vmem:[#allocation2 + $0xb0] sm:$0xf] %v330
    %335 = vst [vmem:[#allocation2 + $0xb8] sm:$0xf] %v332
    %s336 = scalar_lea.vmem %s1, 21
    %v337 = vld [vmem:[%s336] sm:$0x7]
    %v339 = vlaneseq
    %v340 = vshrl.u32 %v339, 7
    %v341 = vsub.s32 0, %v340
    %v342 = vrot.slane %v337, %v341
    %v343 = vlaneseq
    %v344 = vshrl.u32 %v343, 7
    %v345 = vsub.s32 1, %v344
    %v346 = vrot.slane %v337, %v345
    %v347 = vlaneseq
    %v348 = vshrl.u32 %v347, 7
    %v349 = vsub.s32 2, %v348
    %v350 = vrot.slane %v337, %v349
    %v354 = vadd.f32 %v331, %v342
    %v355 = vadd.f32 %v330, %v346
    %v356 = vadd.f32 %v332, %v350
    %v359 = vcombine.low %v354, %v355
    %v361 = vmax.f32 %v321, %v359
    %v362 = vmax.f32 %v322, %v356
    %363 = vrot.lane.b32.xlu0 %v54, 90
    %v364 = vpop.permute.xlu0 %363
    %365 = vrot.lane.b32.xlu0 %v57, 90
    %v366 = vpop.permute.xlu0 %365
    %367 = vrot.lane.b32.xlu0 %v55, 90
    %v368 = vpop.permute.xlu0 %367
    %vm369 = vcmp.lt.s32.totalorder %v88, 90
    %v370 = vsel %vm369, %v366, %v368
    %v371 = vsel %vm369, %v364, %v366
    %v372 = vsel %vm369, %v368, %v364
    %373 = vst [vmem:[#allocation2 + $0xc0] sm:$0xf] %v371
    %374 = vst [vmem:[#allocation2 + $0xc8] sm:$0xf] %v370
    %375 = vst [vmem:[#allocation2 + $0xd0] sm:$0xf] %v372
    %s376 = scalar_lea.vmem %s1, 24
    %v377 = vld [vmem:[%s376] sm:$0x7]
    %v379 = vlaneseq
    %v380 = vshrl.u32 %v379, 7
    %v381 = vsub.s32 0, %v380
    %v382 = vrot.slane %v377, %v381
    %v383 = vlaneseq
    %v384 = vshrl.u32 %v383, 7
    %v385 = vsub.s32 1, %v384
    %v386 = vrot.slane %v377, %v385
    %v387 = vlaneseq
    %v388 = vshrl.u32 %v387, 7
    %v389 = vsub.s32 2, %v388
    %v390 = vrot.slane %v377, %v389
    %v394 = vadd.f32 %v371, %v382
    %v395 = vadd.f32 %v370, %v386
    %v396 = vadd.f32 %v372, %v390
    %v399 = vcombine.low %v394, %v395
    %v401 = vmax.f32 %v361, %v399
    %v402 = vmax.f32 %v362, %v396
    %v404 = vcombine.high %v401, %v401
    %406 = vst [vmem:[#allocation2 + $0xd8] sm:$0xf] %v401
    %407 = vst [vmem:[#allocation2 + $0xe0] sm:$0xf] %v404
    %408 = vst [vmem:[#allocation2 + $0xe8] sm:$0xf] %v402
    %v409 = vld [vmem:[#allocation2] sm:$0xff]
    %v410 = vld [vmem:[#allocation2 + $0x8] sm:$0xff]
    %v411 = vld [vmem:[#allocation2 + $0x10] sm:$0xff]
    %v412 = vld [vmem:[#allocation2 + $0x18] sm:$0xff]
    %v413 = vld [vmem:[#allocation2 + $0x20] sm:$0xff]
    %v414 = vld [vmem:[#allocation2 + $0x28] sm:$0xff]
    %v415 = vld [vmem:[#allocation2 + $0x30] sm:$0xff]
    %v416 = vld [vmem:[#allocation2 + $0x38] sm:$0xff]
    %v417 = vld [vmem:[#allocation2 + $0x40] sm:$0xff]
    %v418 = vld [vmem:[#allocation2 + $0x48] sm:$0xff]
    %v419 = vld [vmem:[#allocation2 + $0x50] sm:$0xff]
    %v420 = vld [vmem:[#allocation2 + $0x58] sm:$0xff]
    %v421 = vld [vmem:[#allocation2 + $0x60] sm:$0xff]
    %v422 = vld [vmem:[#allocation2 + $0x68] sm:$0xff]
    %v423 = vld [vmem:[#allocation2 + $0x70] sm:$0xff]
    %v424 = vld [vmem:[#allocation2 + $0x78] sm:$0xff]
    %v425 = vld [vmem:[#allocation2 + $0x80] sm:$0xff]
    %v426 = vld [vmem:[#allocation2 + $0x88] sm:$0xff]
    %v427 = vld [vmem:[#allocation2 + $0x90] sm:$0xff]
    %v428 = vld [vmem:[#allocation2 + $0x98] sm:$0xff]
    %v429 = vld [vmem:[#allocation2 + $0xa0] sm:$0xff]
    %v430 = vld [vmem:[#allocation2 + $0xa8] sm:$0xff]
    %v431 = vld [vmem:[#allocation2 + $0xb0] sm:$0xff]
    %v432 = vld [vmem:[#allocation2 + $0xb8] sm:$0xff]
    %v433 = vld [vmem:[#allocation2 + $0xc0] sm:$0xff]
    %v434 = vld [vmem:[#allocation2 + $0xc8] sm:$0xff]
    %v435 = vld [vmem:[#allocation2 + $0xd0] sm:$0xff]
    %v436 = vld [vmem:[#allocation2 + $0xd8] sm:$0xff]
    %v437 = vld [vmem:[#allocation2 + $0xe0] sm:$0xff]
    %v438 = vld [vmem:[#allocation2 + $0xe8] sm:$0xff]
    %vm439 = vcmask 654336
    %v441 = vsel %vm439, %v14, 0
    %443 = vmatprep.subr.mxu0 0.0
    %444 = vmatpush1.msra.mxu0 0.0
    %445 = vmatprep.subr.mxu0 0.0
    %446 = vmatpush1.msra.mxu0 0.0
    %447 = vmatprep.subr.mxu0 0.0
    %448 = vmatpush1.msra.mxu0 0.0
    %449 = vmatprep.subr.mxu0 0.0
    %450 = vmatpush1.msra.mxu0 0.0
    %451 = vmatprep.subr.mxu0 0.0
    %452 = vmatpush1.msra.mxu0 0.0
    %453 = vmatprep.subr.mxu0 0.0
    %454 = vmatpush1.msra.mxu0 0.0
    %455 = vmatprep.subr.mxu0 %v437
    %456 = vmatpush1.msra.mxu0 %v436
    %457 = vmatprep.subr.mxu0 %v434
    %458 = vmatpush1.msra.mxu0 %v433
    %459 = vmatprep.subr.mxu0 %v431
    %460 = vmatpush1.msra.mxu0 %v430
    %461 = vmatprep.subr.mxu0 %v428
    %462 = vmatpush1.msra.mxu0 %v427
    %463 = vmatprep.subr.mxu0 %v425
    %464 = vmatpush1.msra.mxu0 %v424
    %465 = vmatprep.subr.mxu0 %v422
    %466 = vmatpush1.msra.mxu0 %v421
    %467 = vmatprep.subr.mxu0 %v419
    %468 = vmatpush1.msra.mxu0 %v418
    %469 = vmatprep.subr.mxu0 %v416
    %470 = vmatpush1.msra.mxu0 %v415
    %471 = vmatprep.subr.mxu0 %v413
    %472 = vmatpush1.msra.mxu0 %v412
    %473 = vmatprep.subr.mxu0 %v410
    %474 = vmatpush1.msra.mxu0 %v409
    %475 = vmatprep.subr.mxu0 0.0
    %476 = vmatpush2.msra.mxu0 0.0
    %477 = vmatprep.subr.mxu0 0.0
    %478 = vmatpush2.msra.mxu0 0.0
    %479 = vmatprep.subr.mxu0 0.0
    %480 = vmatpush2.msra.mxu0 0.0
    %481 = vmatprep.subr.mxu0 0.0
    %482 = vmatpush2.msra.mxu0 0.0
    %483 = vmatprep.subr.mxu0 0.0
    %484 = vmatpush2.msra.mxu0 0.0
    %485 = vmatprep.subr.mxu0 0.0
    %486 = vmatpush2.msra.mxu0 0.0
    %487 = vmatprep.subr.mxu0 0.0
    %488 = vmatpush2.msra.mxu0 0.0
    %489 = vmatprep.subr.mxu0 0.0
    %490 = vmatpush2.msra.mxu0 0.0
    %491 = vmatprep.subr.mxu0 0.0
    %492 = vmatpush2.msra.mxu0 0.0
    %493 = vmatprep.subr.mxu0 0.0
    %494 = vmatpush2.msra.mxu0 0.0
    %495 = vmatprep.subr.mxu0 0.0
    %496 = vmatpush2.msra.mxu0 0.0
    %497 = vmatprep.subr.mxu0 0.0
    %498 = vmatpush2.msra.mxu0 0.0
    %499 = vmatprep.subr.mxu0 0.0
    %500 = vmatpush2.msra.mxu0 0.0
    %501 = vmatprep.subr.mxu0 0.0
    %502 = vmatpush2.msra.mxu0 0.0
    %503 = vmatprep.subr.mxu0 0.0
    %504 = vmatpush2.msra.mxu0 0.0
    %505 = vmatprep.subr.mxu0 0.0
    %506 = vmatpush2.msra.mxu0 0.0
    %507 = vmatprep.mubr.f32.mxu0 0.0
    %508 = vmatmul.mubr.f32.gmra.mxu0 %v441
    %v509 = vpop.f32.mrf.mxu0
    %v510 = vadd.f32 0.0, %v509
    %v511 = vpop.f32.mrf.mxu0
    %v512 = vadd.f32 0.0, %v511
    %513 = vdwg.mxu0
    %514 = vmatprep.subr.mxu0 0.0
    %515 = vmatpush1.msra.mxu0 0.0
    %516 = vmatprep.subr.mxu0 0.0
    %517 = vmatpush1.msra.mxu0 0.0
    %518 = vmatprep.subr.mxu0 0.0
    %519 = vmatpush1.msra.mxu0 0.0
    %520 = vmatprep.subr.mxu0 0.0
    %521 = vmatpush1.msra.mxu0 0.0
    %522 = vmatprep.subr.mxu0 0.0
    %523 = vmatpush1.msra.mxu0 0.0
    %524 = vmatprep.subr.mxu0 0.0
    %525 = vmatpush1.msra.mxu0 0.0
    %526 = vmatprep.subr.mxu0 0.0
    %527 = vmatpush1.msra.mxu0 %v438
    %528 = vmatprep.subr.mxu0 0.0
    %529 = vmatpush1.msra.mxu0 %v435
    %530 = vmatprep.subr.mxu0 0.0
    %531 = vmatpush1.msra.mxu0 %v432
    %532 = vmatprep.subr.mxu0 0.0
    %533 = vmatpush1.msra.mxu0 %v429
    %534 = vmatprep.subr.mxu0 0.0
    %535 = vmatpush1.msra.mxu0 %v426
    %536 = vmatprep.subr.mxu0 0.0
    %537 = vmatpush1.msra.mxu0 %v423
    %538 = vmatprep.subr.mxu0 0.0
    %539 = vmatpush1.msra.mxu0 %v420
    %540 = vmatprep.subr.mxu0 0.0
    %541 = vmatpush1.msra.mxu0 %v417
    %542 = vmatprep.subr.mxu0 0.0
    %543 = vmatpush1.msra.mxu0 %v414
    %544 = vmatprep.subr.mxu0 0.0
    %545 = vmatpush1.msra.mxu0 %v411
    %546 = vmatprep.subr.mxu0 0.0
    %547 = vmatpush2.msra.mxu0 0.0
    %548 = vmatprep.subr.mxu0 0.0
    %549 = vmatpush2.msra.mxu0 0.0
    %550 = vmatprep.subr.mxu0 0.0
    %551 = vmatpush2.msra.mxu0 0.0
    %552 = vmatprep.subr.mxu0 0.0
    %553 = vmatpush2.msra.mxu0 0.0
    %554 = vmatprep.subr.mxu0 0.0
    %555 = vmatpush2.msra.mxu0 0.0
    %556 = vmatprep.subr.mxu0 0.0
    %557 = vmatpush2.msra.mxu0 0.0
    %558 = vmatprep.subr.mxu0 0.0
    %559 = vmatpush2.msra.mxu0 0.0
    %560 = vmatprep.subr.mxu0 0.0
    %561 = vmatpush2.msra.mxu0 0.0
    %562 = vmatprep.subr.mxu0 0.0
    %563 = vmatpush2.msra.mxu0 0.0
    %564 = vmatprep.subr.mxu0 0.0
    %565 = vmatpush2.msra.mxu0 0.0
    %566 = vmatprep.subr.mxu0 0.0
    %567 = vmatpush2.msra.mxu0 0.0
    %568 = vmatprep.subr.mxu0 0.0
    %569 = vmatpush2.msra.mxu0 0.0
    %570 = vmatprep.subr.mxu0 0.0
    %571 = vmatpush2.msra.mxu0 0.0
    %572 = vmatprep.subr.mxu0 0.0
    %573 = vmatpush2.msra.mxu0 0.0
    %574 = vmatprep.subr.mxu0 0.0
    %575 = vmatpush2.msra.mxu0 0.0
    %576 = vmatprep.subr.mxu0 0.0
    %577 = vmatpush2.msra.mxu0 0.0
    %578 = vmatprep.mubr.f32.mxu0 0.0
    %579 = vmatmul.mubr.f32.gmra.mxu0 %v441
    %v580 = vpop.f32.mrf.mxu0
    %v581 = vadd.f32 0.0, %v580
    %v582 = vpop.f32.mrf.mxu0
    %583 = vdwg.mxu0
    %s584 = smul.addr %s51, 8
    %s585 = scalar_lea.vmem %s3, %s584
    %586 = vst [vmem:[%s585] sm:$0xff] %v510
    %587 = vst [vmem:[%s585 + $0x8] sm:$0xff] %v512
    %588 = vst [vmem:[%s585 + $0x10] sm:$0xff] %v581
  $region18: #{non_learnable_layer.1} parent=0 // loop_footer
    %s50 = sadd.s32 1, %s46
  $region19: #{non_learnable_layer.1} parent=0 // loop_footer_branch
    %45 = sbr.rel target = $region15
  $region20: #{non_learnable_layer.1} parent=0 // loop_exit
    _
  // Predicated region
  $region21: #{non_learnable_layer.1} parent=0 // pred_check
    _
  $region22: #{non_learnable_layer.1} parent=0 // pred_check_branch
    %590 = sbr.rel (0) target = $region24
  $region23: #{non_learnable_layer.1} parent=0 // pred_region
    _
  $region24: #{non_learnable_layer.1} parent=0 // pred_fallthru
    _
  // Predicated region
  $region25: #{non_learnable_layer.1} parent=0 // pred_check
    _
  $region26: #{non_learnable_layer.1} parent=0 // pred_check_branch
    %592 = sbr.rel (0) target = $region28
  $region27: #{non_learnable_layer.1} parent=0 // pred_region
    _
  $region28: #{non_learnable_layer.1} parent=0 // pred_fallthru
    _

</llo_original>
